<compile_context>
chip_gen: v5e
topology: v5e:2x2
jax: 0.10.0
libtpu: 0.0.40
codegen_flags: <defaults>
</compile_context>

<pallas_src>
from functools import partial

import jax
import jax.numpy as jnp
from jax.experimental import pallas as pl
from jax.experimental.pallas import tpu as pltpu

LANE = 128          # lane width -> padded output width (lane-dense stores)
NEG_PAD = -1e30     # bias padding value for dummy output lanes


def ffnn_kernel(x_ref, w1_ref, b1_ref, w2_ref, b2_ref, out_ref):
    # x_ref : (TB, D)   w1_ref : (D, H)     b1_ref : (1, H)
    # w2_ref: (H, OP)   b2_ref : (1, OP)    out_ref: (TB, OP)   (OP = 128)
    x = x_ref[...]
    b1 = b1_ref[...]          # hoisted single reads
    b2 = b2_ref[...]

    # --- W1: Linear(input_dim -> h) + ReLU ---
    hid = jnp.dot(x, w1_ref[...], preferred_element_type=jnp.float32) + b1
    hid = jnp.maximum(hid, 0.0)

    # --- Dropout (p=0.3): identity in eval mode ---

    # --- W2: Linear(h -> 5), padded to 128 lanes (padded lanes ~= -1e30) ---
    logits = jnp.dot(hid, w2_ref[...], preferred_element_type=jnp.float32) + b2

    # --- LogSoftmax(dim=-1), numerically stable; padded lanes contribute 0 ---
    m = jnp.max(logits, axis=-1, keepdims=True)
    shifted = logits - m
    lse = jnp.log(jnp.sum(jnp.exp(shifted), axis=-1, keepdims=True))
    out_ref[...] = (shifted - lse).astype(out_ref.dtype)


def _round_up(x, m):
    return (x + m - 1) // m * m


def _choose_tile_b(B):
    # Large batch: 512/256-row tiles (256-aligned for the v6e/v7x MXU;
    # amortizes the ~600-cycle per-grid-step overhead; keeps >= 2 grid steps
    # so megacore/2-TC chips can shard the "parallel" batch axis).
    if B >= 1024:
        return 512
    if B >= 512:
        return 256
    # Small batch: process the whole (8-padded) batch in a single grid step.
    return _round_up(B, 8)


@partial(jax.jit, static_argnames=())
def _ffnn_forward_impl(x, w1_t, b1, w2_t, b2):
    B, D = x.shape
    H = w1_t.shape[1]
    O = w2_t.shape[1]
    O_pad = LANE

    tile_b = _choose_tile_b(B)
    B_pad = _round_up(B, tile_b)

    # Zero-pad ragged batch rows (results sliced away below).
    if B_pad != B:
        x = jnp.pad(x, ((0, B_pad - B), (0, 0)))

    # Lane-dense output: zero-pad W2 columns, pad bias with a large negative
    # value so padded lanes vanish in the softmax sum (exp(-1e30 - m) == 0).
    w2_pad = jnp.zeros((H, O_pad), jnp.float32).at[:, :O].set(w2_t)
    b2_pad = jnp.full((1, O_pad), NEG_PAD, jnp.float32).at[:, :O].set(b2)

    grid = (B_pad // tile_b,)

    flops = 2 * B_pad * (D * H + H * O_pad) + 6 * B_pad * O_pad
    transcendentals = B_pad * (O_pad + 1)                      # exp + log
    bytes_accessed = 4 * (B_pad * D + D * H + H + H * O_pad + O_pad
                          + B_pad * O_pad)

    out_padded = pl.pallas_call(
        ffnn_kernel,
        out_shape=jax.ShapeDtypeStruct((B_pad, O_pad), jnp.float32),
        grid_spec=pltpu.PrefetchScalarGridSpec(
            num_scalar_prefetch=0,
            grid=grid,
            in_specs=[
                pl.BlockSpec((tile_b, D), lambda i: (i, 0)),   # x tile over batch
                pl.BlockSpec((D, H), lambda i: (0, 0)),        # W1^T (resident)
                pl.BlockSpec((1, H), lambda i: (0, 0)),        # b1
                pl.BlockSpec((H, O_pad), lambda i: (0, 0)),    # W2^T padded (resident)
                pl.BlockSpec((1, O_pad), lambda i: (0, 0)),    # b2 padded
            ],
            out_specs=pl.BlockSpec((tile_b, O_pad), lambda i: (i, 0)),
        ),
        compiler_params=pltpu.CompilerParams(
            dimension_semantics=("parallel",)),
        cost_estimate=pl.CostEstimate(
            flops=int(flops),
            transcendentals=int(transcendentals),
            bytes_accessed=int(bytes_accessed)),
    )(x, w1_t, b1, w2_pad, b2_pad)

    # Slice back to the real batch / real 5-class output.
    return out_padded[:B, :O]


def ffnn_forward(x, w1_t, b1, w2_t, b2):
    """x: (B, D); w1_t: (D, H); b1: (1, H); w2_t: (H, O); b2: (1, O)."""
    return _ffnn_forward_impl(x, w1_t, b1, w2_t, b2)


def reference_forward(x, w1_t, b1, w2_t, b2):
    h = jnp.maximum(x @ w1_t + b1, 0.0)
    logits = h @ w2_t + b2
    return jax.nn.log_softmax(logits, axis=-1)


if __name__ == "__main__":
    # Small shapes consistent with the module: batch=8, input_dim=32, h=32, out=5
    B, D, H, O = 8, 32, 32, 5

    key = jax.random.PRNGKey(0)
    kx, k1, k2, k3, k4 = jax.random.split(key, 5)

    x = jax.random.normal(kx, (B, D), dtype=jnp.float32)

    # Deterministic init mimicking nn.Linear's uniform(-1/sqrt(fan_in), 1/sqrt(fan_in))
    bound1 = 1.0 / jnp.sqrt(D)
    w1_t = jax.random.uniform(k1, (D, H), minval=-bound1, maxval=bound1, dtype=jnp.float32)
    b1 = jax.random.uniform(k2, (1, H), minval=-bound1, maxval=bound1, dtype=jnp.float32)
    bound2 = 1.0 / jnp.sqrt(H)
    w2_t = jax.random.uniform(k3, (H, O), minval=-bound2, maxval=bound2, dtype=jnp.float32)
    b2 = jax.random.uniform(k4, (1, O), minval=-bound2, maxval=bound2, dtype=jnp.float32)

    out = jax.block_until_ready(ffnn_forward(x, w1_t, b1, w2_t, b2))
    ref = reference_forward(x, w1_t, b1, w2_t, b2)
    assert out.shape == (B, O), out.shape
    assert jnp.allclose(out, ref, atol=1e-5, rtol=1e-5), "mismatch vs reference"

    # Ragged-batch path (padding + slice-back) on a tiny non-multiple batch.
    x2 = jax.random.normal(kx, (6, D), dtype=jnp.float32)
    out2 = jax.block_until_ready(ffnn_forward(x2, w1_t, b1, w2_t, b2))
    ref2 = reference_forward(x2, w1_t, b1, w2_t, b2)
    assert out2.shape == (6, O), out2.shape
    assert jnp.allclose(out2, ref2, atol=1e-5, rtol=1e-5), "ragged mismatch vs reference"

    print("KERNEL_OK")
</pallas_src>

<mosaic_0001>
module attributes {stable_mosaic.version = 11 : i64} {
  func.func @ffnn_kernel(%arg0: i32, %arg1: memref<8x32xf32, #tpu.memory_space<vmem>>, %arg2: memref<32x32xf32, #tpu.memory_space<vmem>>, %arg3: memref<1x32xf32, #tpu.memory_space<vmem>>, %arg4: memref<32x128xf32, #tpu.memory_space<vmem>>, %arg5: memref<1x128xf32, #tpu.memory_space<vmem>>, %arg6: memref<8x128xf32, #tpu.memory_space<vmem>>) attributes {dimension_semantics = [#tpu.dimension_semantics<parallel>], iteration_bounds = array<i64: 1>, scalar_prefetch = 0 : i64, scratch_operands = 0 : i64, tpu.core_type = #tpu.core_type<tc>, window_params = [{transform_indices = @transform_0, window_bounds = array<i64: 8, 32>}, {pipeline_mode = #tpu.pipeline_mode<synchronous>, transform_indices = @transform_1, window_bounds = array<i64: 32, 32>}, {pipeline_mode = #tpu.pipeline_mode<synchronous>, transform_indices = @transform_2, window_bounds = array<i64: 1, 32>}, {pipeline_mode = #tpu.pipeline_mode<synchronous>, transform_indices = @transform_3, window_bounds = array<i64: 32, 128>}, {pipeline_mode = #tpu.pipeline_mode<synchronous>, transform_indices = @transform_4, window_bounds = array<i64: 1, 128>}, {transform_indices = @transform_5, window_bounds = array<i64: 8, 128>}]} {
    %c0 = arith.constant 0 : index
    %c0_0 = arith.constant 0 : index
    %0 = vector.load %arg1[%c0, %c0_0] : memref<8x32xf32, #tpu.memory_space<vmem>>, vector<8x32xf32>
    %c0_1 = arith.constant 0 : index
    %c0_2 = arith.constant 0 : index
    %1 = vector.load %arg3[%c0_1, %c0_2] : memref<1x32xf32, #tpu.memory_space<vmem>>, vector<1x32xf32>
    %c0_3 = arith.constant 0 : index
    %c0_4 = arith.constant 0 : index
    %2 = vector.load %arg5[%c0_3, %c0_4] : memref<1x128xf32, #tpu.memory_space<vmem>>, vector<1x128xf32>
    %c0_5 = arith.constant 0 : index
    %c0_6 = arith.constant 0 : index
    %3 = vector.load %arg2[%c0_5, %c0_6] : memref<32x32xf32, #tpu.memory_space<vmem>>, vector<32x32xf32>
    %cst = arith.constant dense<0.000000e+00> : vector<8x32xf32>
    %4 = tpu.matmul %0, %3, %cst {dimension_numbers = #tpu.dot_dimension_numbers<[1], [0], [0], [1], [0, 0, 1, 1], [], []>} : vector<8x32xf32>, vector<32x32xf32>, vector<8x32xf32> -> vector<8x32xf32>
    %5 = vector.broadcast %1 : vector<1x32xf32> to vector<8x32xf32>
    %6 = arith.addf %4, %5 : vector<8x32xf32>
    %cst_7 = arith.constant 0.000000e+00 : f32
    %7 = vector.broadcast %cst_7 : f32 to vector<8x32xf32>
    %8 = arith.maximumf %6, %7 : vector<8x32xf32>
    %c0_8 = arith.constant 0 : index
    %c0_9 = arith.constant 0 : index
    %9 = vector.load %arg4[%c0_8, %c0_9] : memref<32x128xf32, #tpu.memory_space<vmem>>, vector<32x128xf32>
    %cst_10 = arith.constant dense<0.000000e+00> : vector<8x128xf32>
    %10 = tpu.matmul %8, %9, %cst_10 {dimension_numbers = #tpu.dot_dimension_numbers<[1], [0], [0], [1], [0, 0, 1, 1], [], []>} : vector<8x32xf32>, vector<32x128xf32>, vector<8x128xf32> -> vector<8x128xf32>
    %11 = vector.broadcast %2 : vector<1x128xf32> to vector<8x128xf32>
    %12 = arith.addf %10, %11 : vector<8x128xf32>
    %cst_11 = arith.constant dense<0xFF800000> : vector<8xf32>
    %13 = vector.multi_reduction <maximumf>, %12, %cst_11 [1] : vector<8x128xf32> to vector<8xf32>
    %14 = vector.shape_cast %13 : vector<8xf32> to vector<8x1xf32>
    %15 = vector.broadcast %14 : vector<8x1xf32> to vector<8x128xf32>
    %16 = arith.subf %12, %15 : vector<8x128xf32>
    %17 = math.exp %16 : vector<8x128xf32>
    %cst_12 = arith.constant dense<0.000000e+00> : vector<8xf32>
    %18 = vector.multi_reduction <add>, %17, %cst_12 [1] : vector<8x128xf32> to vector<8xf32>
    %19 = vector.shape_cast %18 : vector<8xf32> to vector<8x1xf32>
    %20 = math.log %19 : vector<8x1xf32>
    %21 = vector.broadcast %20 : vector<8x1xf32> to vector<8x128xf32>
    %22 = arith.subf %16, %21 : vector<8x128xf32>
    %c0_13 = arith.constant 0 : index
    %c0_14 = arith.constant 0 : index
    %23 = vector.load %arg6[%c0_13, %c0_14] : memref<8x128xf32, #tpu.memory_space<vmem>>, vector<8x128xf32>
    tpu.vector_store %arg6[%c0_13, %c0_14], %22 {strides = array<i32>} : memref<8x128xf32, #tpu.memory_space<vmem>>, vector<8x128xf32>,
    return
  }
  func.func @transform_0(%arg0: i32) -> (i32, i32) {
    %c0_i32 = arith.constant 0 : i32
    %c0_i32_0 = arith.constant 0 : i32
    return %arg0, %c0_i32 : i32, i32
  }
  func.func @transform_1(%arg0: i32) -> (i32, i32) {
    %c0_i32 = arith.constant 0 : i32
    %c0_i32_0 = arith.constant 0 : i32
    %c0_i32_1 = arith.constant 0 : i32
    return %c0_i32, %c0_i32_0 : i32, i32
  }
  func.func @transform_2(%arg0: i32) -> (i32, i32) {
    %c0_i32 = arith.constant 0 : i32
    %c0_i32_0 = arith.constant 0 : i32
    %c0_i32_1 = arith.constant 0 : i32
    return %c0_i32, %c0_i32_0 : i32, i32
  }
  func.func @transform_3(%arg0: i32) -> (i32, i32) {
    %c0_i32 = arith.constant 0 : i32
    %c0_i32_0 = arith.constant 0 : i32
    %c0_i32_1 = arith.constant 0 : i32
    return %c0_i32, %c0_i32_0 : i32, i32
  }
  func.func @transform_4(%arg0: i32) -> (i32, i32) {
    %c0_i32 = arith.constant 0 : i32
    %c0_i32_0 = arith.constant 0 : i32
    %c0_i32_1 = arith.constant 0 : i32
    return %c0_i32, %c0_i32_0 : i32, i32
  }
  func.func @transform_5(%arg0: i32) -> (i32, i32) {
    %c0_i32 = arith.constant 0 : i32
    %c0_i32_0 = arith.constant 0 : i32
    return %arg0, %c0_i32 : i32, i32
  }
}

</mosaic_0001>

<llo_original>
// kernel: _ffnn_forward_impl.1
$region0: #{_ffnn_forward_impl.1}
  #allocation0 [shape = 'u32[]', space=smem, size = 0x4, offset = 0x4, fixed_abs, tag = 'smem constant byte address 0x4 - core index']
  #allocation1 [shape = 'u32[72,128]{1,0:T(1,128)}', space=vmem, size = 0x9000, scoped, tag = 'internal scratch']
  %s0 = inlined_call_operand.vmem [shape: f32[8,32], index: 0, kind: input, shape index: {}]
  %s1 = inlined_call_operand.vmem [shape: f32[32,32], index: 1, kind: input, shape index: {}]
  %s2 = inlined_call_operand.vmem [shape: f32[1,32], index: 2, kind: input, shape index: {}]
  %s3 = inlined_call_operand.vmem [shape: f32[32,128], index: 3, kind: input, shape index: {}]
  %s4 = inlined_call_operand.vmem [shape: f32[1,128], index: 4, kind: input, shape index: {}]
  %s5 = inlined_call_operand.hbm [shape: f32[8,128], index: 5, kind: output, shape index: {}]
  %s6 = sld [smem:[#allocation0]]
  $region30: #{_ffnn_forward_impl.1} parent=0
    _
  %s8 = ssub.s32 1, %s6
  %s9 = scalar_select 0, %s8, %s6
  $region1: #{_ffnn_forward_impl.1} parent=0
    #allocation2 [shape = 'u8[4096]{0}', space=vmem, size = 0x1000, scoped, tag = 'output window, operand 0, single buffered']
    #allocation3 [shape = 's32[1]{0}', space=sflag, size = 0x4, scoped, tag = 'scoped memory for _ffnn_forward_impl.1']
    %10 = vsyncpa [#allocation3], 0
    // Predicated region
    $region2: #{_ffnn_forward_impl.1} parent=1 // pred_check
      _
    $region3: #{_ffnn_forward_impl.1} parent=1 // pred_check_branch
      %12 = sbr.rel (0) target = $region5
    $region4: #{_ffnn_forward_impl.1} parent=1 // pred_region
      _
    $region5: #{_ffnn_forward_impl.1} parent=1 // pred_fallthru
      _
    // Predicated region
    $region6: #{_ffnn_forward_impl.1} parent=1 // pred_check
      _
    $region7: #{_ffnn_forward_impl.1} parent=1 // pred_check_branch
      %14 = sbr.rel (0) target = $region9
    $region8: #{_ffnn_forward_impl.1} parent=1 // pred_region
      _
    $region9: #{_ffnn_forward_impl.1} parent=1 // pred_fallthru
      _
    // Predicated region
    $region10: #{_ffnn_forward_impl.1} parent=1 // pred_check
      _
    $region11: #{_ffnn_forward_impl.1} parent=1 // pred_check_branch
      %16 = sbr.rel (0) target = $region13
    $region12: #{_ffnn_forward_impl.1} parent=1 // pred_region
      _
    $region13: #{_ffnn_forward_impl.1} parent=1 // pred_fallthru
      _
    // Predicated region
    $region14: #{_ffnn_forward_impl.1} parent=1 // pred_check
      _
    $region15: #{_ffnn_forward_impl.1} parent=1 // pred_check_branch
      %18 = sbr.rel (0) target = $region17
    $region16: #{_ffnn_forward_impl.1} parent=1 // pred_region
      _
    $region17: #{_ffnn_forward_impl.1} parent=1 // pred_fallthru
      _
    // Predicated region
    $region18: #{_ffnn_forward_impl.1} parent=1 // pred_check
      _
    $region19: #{_ffnn_forward_impl.1} parent=1 // pred_check_branch
      %20 = sbr.rel (0) target = $region21
    $region20: #{_ffnn_forward_impl.1} parent=1 // pred_region
      _
    $region21: #{_ffnn_forward_impl.1} parent=1 // pred_fallthru
      _
    %v21 = vld [vmem:[%s0] sm:$0xff]
    %v22 = vld [vmem:[%s2] sm:$0x1]
    %v23 = vld [vmem:[%s4] sm:$0x1]
    %v24 = vld [vmem:[%s1] sm:$0xff]
    %v25 = vld [vmem:[%s1 + $0x8] sm:$0xff]
    %v26 = vld [vmem:[%s1 + $0x10] sm:$0xff]
    %v27 = vld [vmem:[%s1 + $0x18] sm:$0xff]
    %v29 = vperm.slane %v22, 0
    %vm31 = vcmask 261120
    %v33 = vsel %vm31, %v21, 0
    %35 = vmatpush.msra.mxu0 0.0
    %36 = vmatpush.msra.mxu0 0.0
    %37 = vmatpush.msra.mxu0 0.0
    %38 = vmatpush.msra.mxu0 0.0
    %39 = vmatpush.msra.mxu0 0.0
    %40 = vmatpush.msra.mxu0 0.0
    %41 = vmatpush.msra.mxu0 0.0
    %42 = vmatpush.msra.mxu0 0.0
    %43 = vmatpush.msra.mxu0 0.0
    %44 = vmatpush.msra.mxu0 0.0
    %45 = vmatpush.msra.mxu0 0.0
    %46 = vmatpush.msra.mxu0 0.0
    %47 = vmatpush.msra.mxu0 %v27
    %48 = vmatpush.msra.mxu0 %v26
    %49 = vmatpush.msra.mxu0 %v25
    %50 = vmatpush.msra.mxu0 %v24
    %51 = vmatmul.f32.gmra.mxu0 %v33
    %v52 = vpop.f32.mrf.mxu0
    %v53 = vadd.f32 %v29, %v52
    %54 = vdwg.mxu0
    %v55 = vmax.f32 %v53, 0.0
    %v56 = vld [vmem:[%s3] sm:$0xff]
    %v57 = vld [vmem:[%s3 + $0x8] sm:$0xff]
    %v58 = vld [vmem:[%s3 + $0x10] sm:$0xff]
    %v59 = vld [vmem:[%s3 + $0x18] sm:$0xff]
    %v61 = vperm.slane %v23, 0
    %v64 = vsel %vm31, %v55, 0
    %66 = vmatpush.msra.mxu0 0.0
    %67 = vmatpush.msra.mxu0 0.0
    %68 = vmatpush.msra.mxu0 0.0
    %69 = vmatpush.msra.mxu0 0.0
    %70 = vmatpush.msra.mxu0 0.0
    %71 = vmatpush.msra.mxu0 0.0
    %72 = vmatpush.msra.mxu0 0.0
    %73 = vmatpush.msra.mxu0 0.0
    %74 = vmatpush.msra.mxu0 0.0
    %75 = vmatpush.msra.mxu0 0.0
    %76 = vmatpush.msra.mxu0 0.0
    %77 = vmatpush.msra.mxu0 0.0
    %78 = vmatpush.msra.mxu0 %v59
    %79 = vmatpush.msra.mxu0 %v58
    %80 = vmatpush.msra.mxu0 %v57
    %81 = vmatpush.msra.mxu0 %v56
    %82 = vmatmul.f32.gmra.mxu0 %v64
    %v83 = vpop.f32.mrf.mxu0
    %v84 = vadd.f32 %v61, %v83
    %85 = vdwg.mxu0
    %86 = vmax.xlane.f32.xlu0 %v84
    %v87 = vpop.xlane.xlu0 %86
    %v88 = vsub.f32 %v84, %v87
    %v89 = vmul.f32 %v88, 1.442695
    %v90 = vpow.pop %v89
    %91 = vadd.xlane.f32.xlu0 %v90
    %v92 = vpop.xlane.xlu0 %91
    %v93 = vlog2.pop %v92
    %v94 = vmul.f32 %v93, 0.6931472
    %v95 = vsub.f32 %v88, %v94
    %96 = vst [vmem:[#allocation2] sm:$0xff] %v95
    // Predicated region
    $region22: #{_ffnn_forward_impl.1} parent=1 // pred_check
      _
    $region23: #{_ffnn_forward_impl.1} parent=1 // pred_check_branch
      %98 = sbr.rel (0) target = $region25
    $region24: #{_ffnn_forward_impl.1} parent=1 // pred_region
      %100 = vsyncadd [#allocation3], 0
      %s102 = sshll.u32 [#allocation2], 4
      %s103 = int_to_ptr.vmem [resolvable:$true] %s102
      %s104 = sshll.u32 %s5, 4
      %s105 = int_to_ptr.hbm [resolvable:$true] %s104
      %107 = dma.vmem_to_hbm [thread:$0]  %s103, 128, %s105, [#allocation3]
    $region25: #{_ffnn_forward_impl.1} parent=1 // pred_fallthru
      _
    // Predicated region
    $region26: #{_ffnn_forward_impl.1} parent=1 // pred_check
      _
    $region27: #{_ffnn_forward_impl.1} parent=1 // pred_check_branch
      %109 = sbr.rel (0) target = $region29
    $region28: #{_ffnn_forward_impl.1} parent=1 // pred_region
      %111 = dma.done [#allocation3], 128
    $region29: #{_ffnn_forward_impl.1} parent=1 // pred_fallthru
      _
    %112 = vsyncpa [#allocation3], 1

</llo_original>
